<compile_context>
chip_gen: v6e
topology: v6e:2x2x1
jax: 0.10.0
libtpu: 0.0.40
codegen_flags: <defaults>
</compile_context>

<pallas_src>
import math
from functools import partial

import jax
import jax.numpy as jnp
from jax.experimental import pallas as pl
from jax.experimental.pallas import tpu as pltpu


def _round_up(x, m):
    return ((x + m - 1) // m) * m


def _vmem_capacity_bytes():
    """Physical VMEM per TensorCore (128 MiB on v5e/v6e, 64 MiB on v7x)."""
    try:
        cap = getattr(pltpu.get_tpu_info(), "vmem_capacity_bytes", None)
        if cap:
            return int(cap)
    except Exception:
        pass
    return 64 << 20  # conservative fallback


def _maybe_single_buffered(block_shape, index_map):
    """BlockSpec for a block whose index never changes across the grid: keep ONE
    resident copy instead of a useless double buffer.  Falls back to the default
    spec if the running JAX version has no pipeline_mode."""
    buffered = getattr(pl, "Buffered", None)
    if buffered is not None:
        try:
            return pl.BlockSpec(block_shape, index_map, pipeline_mode=buffered(1))
        except TypeError:
            pass
    return pl.BlockSpec(block_shape, index_map)


def _gate_kernel(x1_ref, x2_ref, w1_ref, w2_ref, b_ref, o_ref, *, approx_sigmoid):
    x1 = x1_ref[...]
    x2 = x2_ref[...]

    # fc1(x1) + fc2(x2): both matmuls on the MXU with f32 accumulation.
    # Activations already arrive in the weight dtype (bf16 by default).
    z = jnp.dot(x1, w1_ref[...], preferred_element_type=jnp.float32)
    z += jnp.dot(x2, w2_ref[...], preferred_element_type=jnp.float32)

    tn = o_ref.shape[-1]
    if tn == x1_ref.shape[-1]:
        # Full-width output: reuse the tiles already loaded for the matmuls.
        b = b_ref[...]
        x1c, x2c = x1, x2
    else:
        # Column-tiled output: blend only the tn columns this grid step produces.
        col = pl.ds(pl.multiple_of(pl.program_id(1) * tn, 128), tn)
        b = b_ref[:, col]
        x1c = x1_ref[:, col]
        x2c = x2_ref[:, col]

    z += b.astype(jnp.float32)
    if approx_sigmoid:
        # exp on the EUP + approximate reciprocal (also EUP) -> no f32 divide.
        gate = pl.reciprocal(1.0 + jnp.exp(-z), approx=True)
    else:
        gate = jax.nn.sigmoid(z)

    x1c = x1c.astype(jnp.float32)
    x2c = x2c.astype(jnp.float32)
    # gate*x1 + (1-gate)*x2  ==  x2 + gate*(x1 - x2): one fewer vmul, no (1-gate).
    o_ref[...] = (x2c + gate * (x1c - x2c)).astype(o_ref.dtype)


def prepare_params(w1, b1, w2, b2, *, param_dtype=jnp.bfloat16):
    """One-time parameter prep (hoisted out of the per-call path).

    w1, w2 are PyTorch-layout (H_out, H_in).  Returns W1^T, W2^T in `param_dtype`
    plus the fused bias b1+b2 as a (1, H) f32 row.  No padding is performed."""
    w1t = jnp.transpose(w1).astype(param_dtype)
    w2t = jnp.transpose(w2).astype(param_dtype)
    b = (b1 + b2).astype(jnp.float32).reshape(1, -1)
    return w1t, w2t, b


def gate_network(x1, x2, w1t, w2t, b, *, tm=None, tn=None, approx_sigmoid=True):
    """x1, x2: (..., H).  w1t / w2t / b prepared via prepare_params."""
    assert x1.shape == x2.shape
    H = x1.shape[-1]
    assert w1t.shape == (H, H) and w2t.shape == (H, H) and b.shape == (1, H)
    mm_dtype = w1t.dtype
    out_dtype = x1.dtype

    lead_shape = x1.shape[:-1]
    M = int(math.prod(lead_shape)) if lead_shape else 1

    # Cast once in the wrapper (fused with the reshape): halves HBM traffic and
    # VMEM footprint for bf16 params; kernel never re-casts per panel.
    x1f = x1.reshape(M, H).astype(mm_dtype)
    x2f = x2.reshape(M, H).astype(mm_dtype)

    x_item = jnp.dtype(mm_dtype).itemsize
    o_item = jnp.dtype(out_dtype).itemsize

    # ---- generation-aware VMEM budget --------------------------------------
    cap = _vmem_capacity_bytes()
    usable = (cap * 3) // 4                      # headroom for compiler temporaries
    bias_bytes = _round_up(H, 128) * 4

    # ---- column tiling / weight residency -----------------------------------
    # With Buffered(1) resident weights need only ONE copy each.
    resident_w_bytes = 2 * H * H * x_item + bias_bytes
    if tn is None:
        if H % 128 != 0 or resident_w_bytes <= usable // 2:
            tn = H                               # weights fully resident
        else:
            # TODO(synk): on v6e/v7x allow tn=256 with a partial tail panel when H
            # is an odd multiple of 128 (better 2x256 MXU N-dim utilization).
            tn = next(c for c in (512, 256, 128) if H % c == 0)
    assert tn == H or (H % 128 == 0 and tn % 128 == 0 and H % tn == 0)
    weights_resident = tn == H

    if weights_resident:
        w_vmem = resident_w_bytes
        per_row = 2 * (2 * H * x_item) + 2 * H * o_item      # x1,x2 + out (2-buf)
    else:
        w_vmem = 2 * (2 * H * tn * x_item) + bias_bytes      # streamed weight panels
        per_row = 2 * (2 * H * x_item) + 2 * tn * o_item

    # ---- row tile: largest multiple of 8 that fits the chip's budget --------
    if tm is None:
        budget = max(usable - w_vmem, 1 << 20)
        tm = int(min(budget // per_row, 1024))
    tm = max(min(tm, M), 1)
    if M >= 8:
        tm = max(8, (tm // 8) * 8)

    est = w_vmem + tm * per_row
    vmem_limit = int(min(max(est + (8 << 20), 32 << 20), (cap * 9) // 10))

    grid = (pl.cdiv(M, tm), H // tn)

    if weights_resident:
        w1_spec = _maybe_single_buffered((H, H), lambda i, j: (0, 0))
        w2_spec = _maybe_single_buffered((H, H), lambda i, j: (0, 0))
    else:
        w1_spec = pl.BlockSpec((H, tn), lambda i, j: (0, j))
        w2_spec = pl.BlockSpec((H, tn), lambda i, j: (0, j))
    b_spec = _maybe_single_buffered((1, H), lambda i, j: (0, 0))   # always resident

    out = pl.pallas_call(
        partial(_gate_kernel, approx_sigmoid=approx_sigmoid),
        out_shape=jax.ShapeDtypeStruct((M, H), out_dtype),
        grid_spec=pltpu.PrefetchScalarGridSpec(
            num_scalar_prefetch=0,
            grid=grid,
            in_specs=[
                pl.BlockSpec((tm, H), lambda i, j: (i, 0)),    # x1 tile (full K)
                pl.BlockSpec((tm, H), lambda i, j: (i, 0)),    # x2 tile (full K)
                w1_spec,                                       # W1^T
                w2_spec,                                       # W2^T
                b_spec,                                        # fused bias
            ],
            out_specs=pl.BlockSpec((tm, tn), lambda i, j: (i, j)),
        ),
        compiler_params=pltpu.CompilerParams(
            # Row axis is the one to shard across v7x's two TensorCores; the
            # column axis is a plain loop so the x1/x2 streams are never duplicated.
            dimension_semantics=("parallel", "arbitrary"),
            vmem_limit_bytes=vmem_limit,
        ),
    )(x1f, x2f, w1t, w2t, b)

    return out.reshape(x1.shape)


def init_params(key, hidden_dim):
    """Matches the PyTorch module: xavier_normal_ weights, default Linear bias."""
    k1, k2, k3, k4 = jax.random.split(key, 4)
    xavier_std = math.sqrt(2.0 / (hidden_dim + hidden_dim))
    bias_bound = 1.0 / math.sqrt(hidden_dim)
    w1 = jax.random.normal(k1, (hidden_dim, hidden_dim), jnp.float32) * xavier_std
    w2 = jax.random.normal(k2, (hidden_dim, hidden_dim), jnp.float32) * xavier_std
    b1 = jax.random.uniform(k3, (hidden_dim,), jnp.float32, -bias_bound, bias_bound)
    b2 = jax.random.uniform(k4, (hidden_dim,), jnp.float32, -bias_bound, bias_bound)
    return w1, b1, w2, b2


def gate_network_ref(x1, x2, w1, b1, w2, b2):
    gate = jax.nn.sigmoid(x1 @ w1.T + b1 + x2 @ w2.T + b2)
    return gate * x1 + (1.0 - gate) * x2


def _run_case(key, batch, seq, hidden, *, tm=None, tn=None,
              param_dtype=jnp.bfloat16, approx_sigmoid=True,
              atol=8e-2, rtol=5e-2):
    kx1, kx2, kp = jax.random.split(key, 3)
    x1 = jax.random.normal(kx1, (batch, seq, hidden), jnp.float32)
    x2 = jax.random.normal(kx2, (batch, seq, hidden), jnp.float32)
    w1, b1, w2, b2 = init_params(kp, hidden)

    prepared = prepare_params(w1, b1, w2, b2, param_dtype=param_dtype)
    out = gate_network(x1, x2, *prepared, tm=tm, tn=tn,
                       approx_sigmoid=approx_sigmoid)
    out = jax.block_until_ready(out)

    ref = gate_network_ref(x1, x2, w1, b1, w2, b2)
    assert out.shape == x1.shape
    err = float(jnp.max(jnp.abs(out - ref)))
    assert jnp.allclose(out, ref, atol=atol, rtol=rtol), f"mismatch: max abs err {err}"


if __name__ == "__main__":
    key = jax.random.PRNGKey(0)
    k1, k2, k3, k4, k5 = jax.random.split(key, 5)

    # Primary spec shapes: batch=2, seq=8, hidden=32.
    #  (a) f32 params + exact sigmoid -> tight check of the math path.
    _run_case(k1, 2, 8, 32, param_dtype=jnp.float32, approx_sigmoid=False,
              atol=1e-4, rtol=1e-4)
    #  (b) default bf16 MXU path + approx-reciprocal sigmoid -> relaxed tolerance.
    _run_case(k2, 2, 8, 32)

    # Multi-step row grid with a partial last tile (M=18, tm=8).
    _run_case(k3, 2, 9, 32, tm=8)

    # Non-multiple-of-128 hidden dim: no padding, full-width (tm, H) blocks.
    _run_case(k4, 2, 8, 200, tm=8)

    # Column-tiled path (H=256, tn=128) exercising the in-kernel column slice.
    _run_case(k5, 2, 8, 256, tm=8, tn=128)

    print("KERNEL_OK")
</pallas_src>

<mosaic_0001>
module attributes {stable_mosaic.version = 11 : i64} {
  func.func @_gate_kernel(%arg0: i32, %arg1: i32, %arg2: memref<16x32xf32, #tpu.memory_space<vmem>>, %arg3: memref<16x32xf32, #tpu.memory_space<vmem>>, %arg4: memref<32x32xf32, #tpu.memory_space<vmem>>, %arg5: memref<32x32xf32, #tpu.memory_space<vmem>>, %arg6: memref<1x32xf32, #tpu.memory_space<vmem>>, %arg7: memref<16x32xf32, #tpu.memory_space<vmem>>) attributes {dimension_semantics = [#tpu.dimension_semantics<parallel>, #tpu.dimension_semantics<arbitrary>], iteration_bounds = array<i64: 1, 1>, scalar_prefetch = 0 : i64, scratch_operands = 0 : i64, tpu.core_type = #tpu.core_type<tc>, window_params = [{transform_indices = @transform_0, window_bounds = array<i64: 16, 32>}, {transform_indices = @transform_1, window_bounds = array<i64: 16, 32>}, {pipeline_mode = #tpu.pipeline_mode<synchronous>, transform_indices = @transform_2, window_bounds = array<i64: 32, 32>}, {pipeline_mode = #tpu.pipeline_mode<synchronous>, transform_indices = @transform_3, window_bounds = array<i64: 32, 32>}, {pipeline_mode = #tpu.pipeline_mode<synchronous>, transform_indices = @transform_4, window_bounds = array<i64: 1, 32>}, {transform_indices = @transform_5, window_bounds = array<i64: 16, 32>}]} {
    %c0 = arith.constant 0 : index
    %c0_0 = arith.constant 0 : index
    %0 = vector.load %arg2[%c0, %c0_0] : memref<16x32xf32, #tpu.memory_space<vmem>>, vector<16x32xf32>
    %c0_1 = arith.constant 0 : index
    %c0_2 = arith.constant 0 : index
    %1 = vector.load %arg3[%c0_1, %c0_2] : memref<16x32xf32, #tpu.memory_space<vmem>>, vector<16x32xf32>
    %c0_3 = arith.constant 0 : index
    %c0_4 = arith.constant 0 : index
    %2 = vector.load %arg4[%c0_3, %c0_4] : memref<32x32xf32, #tpu.memory_space<vmem>>, vector<32x32xf32>
    %cst = arith.constant dense<0.000000e+00> : vector<16x32xf32>
    %3 = tpu.matmul %0, %2, %cst {dimension_numbers = #tpu.dot_dimension_numbers<[1], [0], [0], [1], [0, 0, 1, 1], [], []>} : vector<16x32xf32>, vector<32x32xf32>, vector<16x32xf32> -> vector<16x32xf32>
    %c0_5 = arith.constant 0 : index
    %c0_6 = arith.constant 0 : index
    %4 = vector.load %arg5[%c0_5, %c0_6] : memref<32x32xf32, #tpu.memory_space<vmem>>, vector<32x32xf32>
    %cst_7 = arith.constant dense<0.000000e+00> : vector<16x32xf32>
    %5 = tpu.matmul %1, %4, %cst_7 {dimension_numbers = #tpu.dot_dimension_numbers<[1], [0], [0], [1], [0, 0, 1, 1], [], []>} : vector<16x32xf32>, vector<32x32xf32>, vector<16x32xf32> -> vector<16x32xf32>
    %6 = arith.addf %3, %5 : vector<16x32xf32>
    %c0_8 = arith.constant 0 : index
    %c0_9 = arith.constant 0 : index
    %7 = vector.load %arg6[%c0_8, %c0_9] : memref<1x32xf32, #tpu.memory_space<vmem>>, vector<1x32xf32>
    %8 = vector.broadcast %7 : vector<1x32xf32> to vector<16x32xf32>
    %9 = arith.addf %6, %8 : vector<16x32xf32>
    %10 = arith.negf %9 : vector<16x32xf32>
    %11 = math.exp %10 : vector<16x32xf32>
    %cst_10 = arith.constant 1.000000e+00 : f32
    %12 = vector.broadcast %cst_10 : f32 to vector<16x32xf32>
    %13 = arith.addf %12, %11 : vector<16x32xf32>
    %14 = arith.divf %12, %13 : vector<16x32xf32>
    %15 = arith.subf %0, %1 : vector<16x32xf32>
    %16 = arith.mulf %14, %15 : vector<16x32xf32>
    %17 = arith.addf %1, %16 : vector<16x32xf32>
    %c0_11 = arith.constant 0 : index
    %c0_12 = arith.constant 0 : index
    %18 = vector.load %arg7[%c0_11, %c0_12] : memref<16x32xf32, #tpu.memory_space<vmem>>, vector<16x32xf32>
    tpu.vector_store %arg7[%c0_11, %c0_12], %17 {strides = array<i32>} : memref<16x32xf32, #tpu.memory_space<vmem>>, vector<16x32xf32>,
    return
  }
  func.func @transform_0(%arg0: i32, %arg1: i32) -> (i32, i32) {
    %c0_i32 = arith.constant 0 : i32
    %c0_i32_0 = arith.constant 0 : i32
    return %arg0, %c0_i32 : i32, i32
  }
  func.func @transform_1(%arg0: i32, %arg1: i32) -> (i32, i32) {
    %c0_i32 = arith.constant 0 : i32
    %c0_i32_0 = arith.constant 0 : i32
    return %arg0, %c0_i32 : i32, i32
  }
  func.func @transform_2(%arg0: i32, %arg1: i32) -> (i32, i32) {
    %c0_i32 = arith.constant 0 : i32
    %c0_i32_0 = arith.constant 0 : i32
    %c0_i32_1 = arith.constant 0 : i32
    return %c0_i32, %c0_i32_0 : i32, i32
  }
  func.func @transform_3(%arg0: i32, %arg1: i32) -> (i32, i32) {
    %c0_i32 = arith.constant 0 : i32
    %c0_i32_0 = arith.constant 0 : i32
    %c0_i32_1 = arith.constant 0 : i32
    return %c0_i32, %c0_i32_0 : i32, i32
  }
  func.func @transform_4(%arg0: i32, %arg1: i32) -> (i32, i32) {
    %c0_i32 = arith.constant 0 : i32
    %c0_i32_0 = arith.constant 0 : i32
    %c0_i32_1 = arith.constant 0 : i32
    return %c0_i32, %c0_i32_0 : i32, i32
  }
  func.func @transform_5(%arg0: i32, %arg1: i32) -> (i32, i32) {
    %c0_i32 = arith.constant 0 : i32
    return %arg0, %arg1 : i32, i32
  }
}

</mosaic_0001>

<llo_original>
// kernel: tpu_custom_call.1
$region0: #{tpu_custom_call.1}
  #allocation0 [shape = 'u32[]', space=smem, size = 0x4, offset = 0x4, fixed_abs, tag = 'smem constant byte address 0x4 - core index']
  #allocation1 [shape = 'u32[144,128]{1,0:T(1,128)}', space=vmem, size = 0x12000, scoped, tag = 'internal scratch']
  %s0 = inlined_call_operand.hbm [shape: f32[16,32], index: 0, kind: input, shape index: {}]
  %s1 = inlined_call_operand.hbm [shape: f32[16,32], index: 1, kind: input, shape index: {}]
  %s2 = inlined_call_operand.hbm [shape: f32[32,32], index: 2, kind: input, shape index: {}]
  %s3 = inlined_call_operand.hbm [shape: f32[32,32], index: 3, kind: input, shape index: {}]
  %s4 = inlined_call_operand.vmem [shape: f32[1,32], index: 4, kind: input, shape index: {}]
  %s5 = inlined_call_operand.hbm [shape: f32[16,32], index: 5, kind: output, shape index: {}]
  %s6 = sld [smem:[#allocation0]]
  $region46: #{tpu_custom_call.1} parent=0
    _
  %s8 = ssub.s32 1, %s6
  %s9 = scalar_select 0, %s8, %s6
  $region1: #{tpu_custom_call.1} parent=0
    #allocation2 [shape = 'u8[8192]{0}', space=vmem, size = 0x2000, scoped, tag = 'input window, operand 0, single buffered']
    #allocation3 [shape = 's32[1]{0}', space=sflag, size = 0x4, scoped, tag = 'scoped memory for tpu_custom_call.1']
    #allocation4 [shape = 's32[1]{0}', space=sflag, size = 0x4, scoped, tag = 'scoped memory for tpu_custom_call.1']
    #allocation5 [shape = 'u8[8192]{0}', space=vmem, size = 0x2000, scoped, tag = 'input window, operand 1, single buffered']
    #allocation6 [shape = 's32[1]{0}', space=sflag, size = 0x4, scoped, tag = 'scoped memory for tpu_custom_call.1']
    #allocation7 [shape = 'u8[16384]{0}', space=vmem, size = 0x4000, scoped, tag = 'input window, operand 2, single buffered']
    #allocation8 [shape = 'u8[16384]{0}', space=vmem, size = 0x4000, scoped, tag = 'input window, operand 3, single buffered']
    #allocation9 [shape = 's32[1]{0}', space=sflag, size = 0x4, scoped, tag = 'scoped memory for tpu_custom_call.1']
    #allocation10 [shape = 'u8[8192]{0}', space=vmem, size = 0x2000, scoped, tag = 'output window, operand 0, single buffered']
    %10 = vsyncpa [#allocation3], 0
    %11 = vsyncpa [#allocation6], 0
    %12 = vsyncpa [#allocation9], 0
    %13 = vsyncpa [#allocation4], 0
    // Predicated region
    $region2: #{tpu_custom_call.1} parent=1 // pred_check
      _
    $region3: #{tpu_custom_call.1} parent=1 // pred_check_branch
      %15 = sbr.rel (0) target = $region5
    $region4: #{tpu_custom_call.1} parent=1 // pred_region
      %s17 = ssub.s32 256, 256
      %18 = vsyncadd [#allocation3], %s17
      %s19 = sshll.u32 [#allocation2], 4
      %s20 = int_to_ptr.vmem [resolvable:$true] %s19
      %25 = dma.hbm_to_vmem [thread:$0]  %s0, 256, %s20, [#allocation3], 128, 128, 8
    $region5: #{tpu_custom_call.1} parent=1 // pred_fallthru
      _
    // Predicated region
    $region6: #{tpu_custom_call.1} parent=1 // pred_check
      _
    $region7: #{tpu_custom_call.1} parent=1 // pred_check_branch
      %27 = sbr.rel (0) target = $region9
    $region8: #{tpu_custom_call.1} parent=1 // pred_region
      %s29 = ssub.s32 256, 256
      %30 = vsyncadd [#allocation6], %s29
      %s31 = sshll.u32 [#allocation5], 4
      %s32 = int_to_ptr.vmem [resolvable:$true] %s31
      %37 = dma.hbm_to_vmem [thread:$0]  %s1, 256, %s32, [#allocation6], 128, 128, 8
    $region9: #{tpu_custom_call.1} parent=1 // pred_fallthru
      _
    // Predicated region
    $region10: #{tpu_custom_call.1} parent=1 // pred_check
      _
    $region11: #{tpu_custom_call.1} parent=1 // pred_check_branch
      %39 = sbr.rel (0) target = $region13
    $region12: #{tpu_custom_call.1} parent=1 // pred_region
      %s41 = ssub.s32 512, 512
      %42 = vsyncadd [#allocation6], %s41
      %s43 = sshll.u32 [#allocation7], 4
      %s44 = int_to_ptr.vmem [resolvable:$true] %s43
      %49 = dma.hbm_to_vmem [thread:$0]  %s2, 512, %s44, [#allocation6], 128, 128, 8
    $region13: #{tpu_custom_call.1} parent=1 // pred_fallthru
      _
    // Predicated region
    $region14: #{tpu_custom_call.1} parent=1 // pred_check
      _
    $region15: #{tpu_custom_call.1} parent=1 // pred_check_branch
      %51 = sbr.rel (0) target = $region17
    $region16: #{tpu_custom_call.1} parent=1 // pred_region
      %s53 = ssub.s32 512, 512
      %54 = vsyncadd [#allocation9], %s53
      %s55 = sshll.u32 [#allocation8], 4
      %s56 = int_to_ptr.vmem [resolvable:$true] %s55
      %61 = dma.hbm_to_vmem [thread:$0]  %s3, 512, %s56, [#allocation9], 128, 128, 8
    $region17: #{tpu_custom_call.1} parent=1 // pred_fallthru
      _
    // Predicated region
    $region18: #{tpu_custom_call.1} parent=1 // pred_check
      _
    $region19: #{tpu_custom_call.1} parent=1 // pred_check_branch
      %63 = sbr.rel (0) target = $region21
    $region20: #{tpu_custom_call.1} parent=1 // pred_region
      _
    $region21: #{tpu_custom_call.1} parent=1 // pred_fallthru
      _
    // Predicated region
    $region22: #{tpu_custom_call.1} parent=1 // pred_check
      _
    $region23: #{tpu_custom_call.1} parent=1 // pred_check_branch
      %65 = sbr.rel (0) target = $region25
    $region24: #{tpu_custom_call.1} parent=1 // pred_region
      %66 = dma.done [#allocation3], 256
    $region25: #{tpu_custom_call.1} parent=1 // pred_fallthru
      _
    // Predicated region
    $region26: #{tpu_custom_call.1} parent=1 // pred_check
      _
    $region27: #{tpu_custom_call.1} parent=1 // pred_check_branch
      %68 = sbr.rel (0) target = $region29
    $region28: #{tpu_custom_call.1} parent=1 // pred_region
      %69 = dma.done [#allocation6], 256
    $region29: #{tpu_custom_call.1} parent=1 // pred_fallthru
      _
    // Predicated region
    $region30: #{tpu_custom_call.1} parent=1 // pred_check
      _
    $region31: #{tpu_custom_call.1} parent=1 // pred_check_branch
      %71 = sbr.rel (0) target = $region33
    $region32: #{tpu_custom_call.1} parent=1 // pred_region
      %72 = dma.done [#allocation6], 512
    $region33: #{tpu_custom_call.1} parent=1 // pred_fallthru
      _
    // Predicated region
    $region34: #{tpu_custom_call.1} parent=1 // pred_check
      _
    $region35: #{tpu_custom_call.1} parent=1 // pred_check_branch
      %74 = sbr.rel (0) target = $region37
    $region36: #{tpu_custom_call.1} parent=1 // pred_region
      %75 = dma.done [#allocation9], 512
    $region37: #{tpu_custom_call.1} parent=1 // pred_fallthru
      _
    %v76 = vld [vmem:[#allocation2] sm:$0xff]
    %v77 = vld [vmem:[#allocation2 + $0x8] sm:$0xff]
    %v78 = vld [vmem:[#allocation5] sm:$0xff]
    %v79 = vld [vmem:[#allocation5 + $0x8] sm:$0xff]
    %v80 = vld [vmem:[#allocation7] sm:$0xff]
    %v81 = vld [vmem:[#allocation7 + $0x8] sm:$0xff]
    %v82 = vld [vmem:[#allocation7 + $0x10] sm:$0xff]
    %v83 = vld [vmem:[#allocation7 + $0x18] sm:$0xff]
    %v84 = vld [vmem:[#allocation8] sm:$0xff]
    %v85 = vld [vmem:[#allocation8 + $0x8] sm:$0xff]
    %v86 = vld [vmem:[#allocation8 + $0x10] sm:$0xff]
    %v87 = vld [vmem:[#allocation8 + $0x18] sm:$0xff]
    %vm88 = vcmask 261120
    %v90 = vsel %vm88, %v78, 0
    %v93 = vsel %vm88, %v79, 0
    %95 = vmatprep.subr.mxu0 0.0
    %96 = vmatpush1.msra.mxu0 0.0
    %97 = vmatprep.subr.mxu0 0.0
    %98 = vmatpush1.msra.mxu0 0.0
    %99 = vmatprep.subr.mxu0 0.0
    %100 = vmatpush1.msra.mxu0 0.0
    %101 = vmatprep.subr.mxu0 0.0
    %102 = vmatpush1.msra.mxu0 0.0
    %103 = vmatprep.subr.mxu0 0.0
    %104 = vmatpush1.msra.mxu0 0.0
    %105 = vmatprep.subr.mxu0 0.0
    %106 = vmatpush1.msra.mxu0 0.0
    %107 = vmatprep.subr.mxu0 0.0
    %108 = vmatpush1.msra.mxu0 0.0
    %109 = vmatprep.subr.mxu0 0.0
    %110 = vmatpush1.msra.mxu0 0.0
    %111 = vmatprep.subr.mxu0 0.0
    %112 = vmatpush1.msra.mxu0 0.0
    %113 = vmatprep.subr.mxu0 0.0
    %114 = vmatpush1.msra.mxu0 0.0
    %115 = vmatprep.subr.mxu0 0.0
    %116 = vmatpush1.msra.mxu0 0.0
    %117 = vmatprep.subr.mxu0 0.0
    %118 = vmatpush1.msra.mxu0 0.0
    %119 = vmatprep.subr.mxu0 0.0
    %120 = vmatpush1.msra.mxu0 %v87
    %121 = vmatprep.subr.mxu0 0.0
    %122 = vmatpush1.msra.mxu0 %v86
    %123 = vmatprep.subr.mxu0 0.0
    %124 = vmatpush1.msra.mxu0 %v85
    %125 = vmatprep.subr.mxu0 0.0
    %126 = vmatpush1.msra.mxu0 %v84
    %127 = vmatprep.subr.mxu0 0.0
    %128 = vmatpush2.msra.mxu0 0.0
    %129 = vmatprep.subr.mxu0 0.0
    %130 = vmatpush2.msra.mxu0 0.0
    %131 = vmatprep.subr.mxu0 0.0
    %132 = vmatpush2.msra.mxu0 0.0
    %133 = vmatprep.subr.mxu0 0.0
    %134 = vmatpush2.msra.mxu0 0.0
    %135 = vmatprep.subr.mxu0 0.0
    %136 = vmatpush2.msra.mxu0 0.0
    %137 = vmatprep.subr.mxu0 0.0
    %138 = vmatpush2.msra.mxu0 0.0
    %139 = vmatprep.subr.mxu0 0.0
    %140 = vmatpush2.msra.mxu0 0.0
    %141 = vmatprep.subr.mxu0 0.0
    %142 = vmatpush2.msra.mxu0 0.0
    %143 = vmatprep.subr.mxu0 0.0
    %144 = vmatpush2.msra.mxu0 0.0
    %145 = vmatprep.subr.mxu0 0.0
    %146 = vmatpush2.msra.mxu0 0.0
    %147 = vmatprep.subr.mxu0 0.0
    %148 = vmatpush2.msra.mxu0 0.0
    %149 = vmatprep.subr.mxu0 0.0
    %150 = vmatpush2.msra.mxu0 0.0
    %151 = vmatprep.subr.mxu0 0.0
    %152 = vmatpush2.msra.mxu0 0.0
    %153 = vmatprep.subr.mxu0 0.0
    %154 = vmatpush2.msra.mxu0 0.0
    %155 = vmatprep.subr.mxu0 0.0
    %156 = vmatpush2.msra.mxu0 0.0
    %157 = vmatprep.subr.mxu0 0.0
    %158 = vmatpush2.msra.mxu0 0.0
    %159 = vmatprep.mubr.f32.mxu0 0.0
    %160 = vmatmul.mubr.f32.gmra.mxu0 %v90
    %v161 = vpop.f32.mrf.mxu0
    %v162 = vadd.f32 0.0, %v161
    %v163 = vpop.f32.mrf.mxu0
    %164 = vmatprep.mubr.f32.mxu0 0.0
    %165 = vmatmul.mubr.f32.gmra.mxu0 %v93
    %v166 = vpop.f32.mrf.mxu0
    %v167 = vadd.f32 0.0, %v166
    %v168 = vpop.f32.mrf.mxu0
    %169 = vdwg.mxu0
    %v171 = vsel %vm88, %v76, 0
    %v174 = vsel %vm88, %v77, 0
    %176 = vmatprep.subr.mxu0 0.0
    %177 = vmatpush1.msra.mxu0 0.0
    %178 = vmatprep.subr.mxu0 0.0
    %179 = vmatpush1.msra.mxu0 0.0
    %180 = vmatprep.subr.mxu0 0.0
    %181 = vmatpush1.msra.mxu0 0.0
    %182 = vmatprep.subr.mxu0 0.0
    %183 = vmatpush1.msra.mxu0 0.0
    %184 = vmatprep.subr.mxu0 0.0
    %185 = vmatpush1.msra.mxu0 0.0
    %186 = vmatprep.subr.mxu0 0.0
    %187 = vmatpush1.msra.mxu0 0.0
    %188 = vmatprep.subr.mxu0 0.0
    %189 = vmatpush1.msra.mxu0 0.0
    %190 = vmatprep.subr.mxu0 0.0
    %191 = vmatpush1.msra.mxu0 0.0
    %192 = vmatprep.subr.mxu0 0.0
    %193 = vmatpush1.msra.mxu0 0.0
    %194 = vmatprep.subr.mxu0 0.0
    %195 = vmatpush1.msra.mxu0 0.0
    %196 = vmatprep.subr.mxu0 0.0
    %197 = vmatpush1.msra.mxu0 0.0
    %198 = vmatprep.subr.mxu0 0.0
    %199 = vmatpush1.msra.mxu0 0.0
    %200 = vmatprep.subr.mxu0 0.0
    %201 = vmatpush1.msra.mxu0 %v83
    %202 = vmatprep.subr.mxu0 0.0
    %203 = vmatpush1.msra.mxu0 %v82
    %204 = vmatprep.subr.mxu0 0.0
    %205 = vmatpush1.msra.mxu0 %v81
    %206 = vmatprep.subr.mxu0 0.0
    %207 = vmatpush1.msra.mxu0 %v80
    %208 = vmatprep.subr.mxu0 0.0
    %209 = vmatpush2.msra.mxu0 0.0
    %210 = vmatprep.subr.mxu0 0.0
    %211 = vmatpush2.msra.mxu0 0.0
    %212 = vmatprep.subr.mxu0 0.0
    %213 = vmatpush2.msra.mxu0 0.0
    %214 = vmatprep.subr.mxu0 0.0
    %215 = vmatpush2.msra.mxu0 0.0
    %216 = vmatprep.subr.mxu0 0.0
    %217 = vmatpush2.msra.mxu0 0.0
    %218 = vmatprep.subr.mxu0 0.0
    %219 = vmatpush2.msra.mxu0 0.0
    %220 = vmatprep.subr.mxu0 0.0
    %221 = vmatpush2.msra.mxu0 0.0
    %222 = vmatprep.subr.mxu0 0.0
    %223 = vmatpush2.msra.mxu0 0.0
    %224 = vmatprep.subr.mxu0 0.0
    %225 = vmatpush2.msra.mxu0 0.0
    %226 = vmatprep.subr.mxu0 0.0
    %227 = vmatpush2.msra.mxu0 0.0
    %228 = vmatprep.subr.mxu0 0.0
    %229 = vmatpush2.msra.mxu0 0.0
    %230 = vmatprep.subr.mxu0 0.0
    %231 = vmatpush2.msra.mxu0 0.0
    %232 = vmatprep.subr.mxu0 0.0
    %233 = vmatpush2.msra.mxu0 0.0
    %234 = vmatprep.subr.mxu0 0.0
    %235 = vmatpush2.msra.mxu0 0.0
    %236 = vmatprep.subr.mxu0 0.0
    %237 = vmatpush2.msra.mxu0 0.0
    %238 = vmatprep.subr.mxu0 0.0
    %239 = vmatpush2.msra.mxu0 0.0
    %240 = vmatprep.mubr.f32.mxu0 0.0
    %241 = vmatmul.mubr.f32.gmra.mxu0 %v171
    %v242 = vpop.f32.mrf.mxu0
    %v243 = vadd.f32 %v162, %v242
    %v244 = vpop.f32.mrf.mxu0
    %245 = vmatprep.mubr.f32.mxu0 0.0
    %246 = vmatmul.mubr.f32.gmra.mxu0 %v174
    %v247 = vpop.f32.mrf.mxu0
    %v248 = vadd.f32 %v167, %v247
    %v249 = vpop.f32.mrf.mxu0
    %250 = vdwg.mxu0
    %v251 = vld [vmem:[%s4] sm:$0x1]
    %v253 = vlaneseq
    %v254 = vshrl.u32 %v253, 7
    %v255 = vsub.s32 0, %v254
    %v256 = vrot.slane %v251, %v255
    %v258 = vadd.f32 %v243, %v256
    %v259 = vadd.f32 %v248, %v256
    %v260 = vxor.u32 %v258, 2147483648
    %v261 = vxor.u32 %v259, 2147483648
    %v262 = vmul.f32 %v260, 1.442695
    %v263 = vpow.pop %v262
    %v264 = vmul.f32 %v261, 1.442695
    %v265 = vpow.pop %v264
    %v266 = vadd.f32 %v263, 1.0
    %v267 = vadd.f32 %v265, 1.0
    %v268 = vrcp.pop %v266
    %v269 = vmul.f32 1.0, %v268
    %v270 = vrcp.pop %v267
    %v271 = vmul.f32 1.0, %v270
    %v272 = vsub.f32 %v76, %v78
    %v273 = vsub.f32 %v77, %v79
    %v274 = vmul.f32 %v269, %v272
    %v275 = vmul.f32 %v271, %v273
    %v276 = vadd.f32 %v78, %v274
    %v277 = vadd.f32 %v79, %v275
    %278 = vst.msk [vmem:[#allocation10] sm:$0xff] %vm88, %v276
    %279 = vst.msk [vmem:[#allocation10 + $0x8] sm:$0xff] %vm88, %v277
    // Predicated region
    $region38: #{tpu_custom_call.1} parent=1 // pred_check
      _
    $region39: #{tpu_custom_call.1} parent=1 // pred_check_branch
      %281 = sbr.rel (0) target = $region41
    $region40: #{tpu_custom_call.1} parent=1 // pred_region
      %s283 = ssub.s32 256, 256
      %284 = vsyncadd [#allocation4], %s283
      %s285 = sshll.u32 [#allocation10], 4
      %s286 = int_to_ptr.vmem [resolvable:$true] %s285
      %291 = dma.vmem_to_hbm [thread:$0]  %s286, 256, %s5, [#allocation4], 128, 128, 8
    $region41: #{tpu_custom_call.1} parent=1 // pred_fallthru
      _
    // Predicated region
    $region42: #{tpu_custom_call.1} parent=1 // pred_check
      _
    $region43: #{tpu_custom_call.1} parent=1 // pred_check_branch
      %293 = sbr.rel (0) target = $region45
    $region44: #{tpu_custom_call.1} parent=1 // pred_region
      %294 = dma.done [#allocation4], 256
    $region45: #{tpu_custom_call.1} parent=1 // pred_fallthru
      _
    %295 = vsyncpa [#allocation3], 1
    %296 = vsyncpa [#allocation6], 1
    %297 = vsyncpa [#allocation9], 1
    %298 = vsyncpa [#allocation4], 1

</llo_original>
